<compile_context>
chip_gen: v5e
topology: v5e:2x2
jax: 0.10.0
libtpu: 0.0.40
codegen_flags: <defaults>
</compile_context>

<pallas_src>
import jax
import jax.numpy as jnp
from jax.experimental import pallas as pl
from jax.experimental.pallas import tpu as pltpu


_GELU_C = 0.7978845608028654  # sqrt(2/pi)


def _gelu_tanh(x):
    # tanh-approximate GELU (tanh runs on the EUP).
    # TODO(synk): PyTorch nn.GELU() default is the exact erf form; tanh approximation
    #             differs by <~3e-3 elementwise.
    return 0.5 * x * (1.0 + jnp.tanh(_GELU_C * (x + 0.044715 * x * x * x)))


def _make_kernel(fold):
    def kernel(ids_ref, tab_ref, w1_ref, b1_ref, w2_ref, b2_ref, o_ref):
        # ids_ref: (TT, 1) int32        tab_ref: (N, E)
        # w1_ref : (E, H2)   b1_ref: (1, H2) f32
        # w2_ref : (H2, H)   b2_ref: (1, H)  f32
        # o_ref  : (TT // fold, fold * H)
        ids = ids_ref[...]                                      # (TT, 1)
        tt = ids.shape[0]
        n_emb = tab_ref.shape[0]

        # Embedding lookup as one_hot(ids) @ table on the MXU (exact for ids in [0, N)).
        # TODO(synk): out-of-range ids produce a zero embedding instead of erroring like torch.
        iota = jax.lax.broadcasted_iota(jnp.int32, (tt, n_emb), 1)
        onehot = (iota == ids).astype(tab_ref.dtype)            # (TT, N)
        emb = jnp.dot(onehot, tab_ref[...],
                      preferred_element_type=jnp.float32)       # (TT, E) f32 acc

        # Linear -> GELU -> (eval-mode Dropout = identity) -> Linear, f32 accumulation.
        h = jnp.dot(emb.astype(w1_ref.dtype), w1_ref[...],
                    preferred_element_type=jnp.float32) + b1_ref[...]
        h = _gelu_tanh(h)
        # TODO(synk): Dropout(p) training-mode RNG dropout omitted (eval-mode identity).
        out = jnp.dot(h.astype(w2_ref.dtype), w2_ref[...],
                      preferred_element_type=jnp.float32) + b2_ref[...]

        # Lane-dense store: pack `fold` token groups side-by-side so the output block's
        # last dim is fold*H (== 128 when H divides 128), giving unmasked full-lane stores.
        if fold > 1:
            rows = tt // fold
            out = jnp.concatenate(
                [out[i * rows:(i + 1) * rows, :] for i in range(fold)], axis=-1)
        o_ref[...] = out.astype(o_ref.dtype)

    return kernel


def _round_up(a, m):
    return (a + m - 1) // m * m


def _vmem_tile_bytes(shape, dtype):
    # VMEM tiles pad the last dim to 128 lanes and the second-minor dim to 8 sublanes.
    r = _round_up(shape[-2], 8) if len(shape) >= 2 else 1
    c = _round_up(shape[-1], 128)
    lead = 1
    for s in shape[:-2]:
        lead *= s
    return lead * r * c * jnp.dtype(dtype).itemsize


def embedding_mlp(ids, emb_table, w1, b1, w2, b2, *, token_tile=1024):
    """Fused EmbeddingMLP forward.

    ids: (B, S) int; emb_table: (N, E); w1: (E, H//2); b1: (H//2,); w2: (H//2, H); b2: (H,).
    Weights are in (in, out) layout (i.e. torch weight transposed).
    Returns (B, S, H) in emb_table.dtype.
    """
    B, S = ids.shape
    N, E = emb_table.shape
    E2, H2 = w1.shape
    H2b, H = w2.shape
    assert E2 == E and H2b == H2 and b1.shape == (H2,) and b2.shape == (H,)

    pdt = emb_table.dtype

    # Fold factor giving a 128-wide (lane-dense) output block when H < 128.
    fold = (128 // H) if (H < 128 and 128 % H == 0) else 1

    # Token-tile alignment: folded output rows must stay sublane-aligned.
    sub = 16 if jnp.dtype(pdt).itemsize == 2 else 8
    align = sub * fold
    T = B * S
    TT = min(_round_up(token_tile, align), _round_up(T, align))
    T_pad = _round_up(T, TT)

    ids_flat = ids.reshape(T, 1).astype(jnp.int32)
    if T_pad != T:
        ids_flat = jnp.pad(ids_flat, ((0, T_pad - T), (0, 0)))   # pad with valid id 0

    # Biases stay f32 (match the f32 MXU accumulator; no per-step cast passes).
    b1_2d = b1.reshape(1, H2).astype(jnp.float32)
    b2_2d = b2.reshape(1, H).astype(jnp.float32)

    # Generation-aware-ish VMEM budget: constants are single-buffered, streamed blocks
    # double-buffered, plus the in-kernel f32 intermediates.
    const_bytes = (_vmem_tile_bytes((N, E), pdt)
                   + _vmem_tile_bytes((E, H2), w1.dtype)
                   + _vmem_tile_bytes((H2, H), w2.dtype)
                   + _vmem_tile_bytes((1, H2), jnp.float32)
                   + _vmem_tile_bytes((1, H), jnp.float32))
    stream_bytes = 2 * (_vmem_tile_bytes((TT, 1), jnp.int32)
                        + _vmem_tile_bytes((TT // fold, fold * H), pdt))
    work_bytes = (_vmem_tile_bytes((TT, N), jnp.float32)
                  + _vmem_tile_bytes((TT, E), jnp.float32)
                  + _vmem_tile_bytes((TT, H2), jnp.float32)
                  + _vmem_tile_bytes((TT, H), jnp.float32))
    vmem_limit = max(32 * 1024 * 1024, int(1.5 * (const_bytes + stream_bytes + work_bytes)))
    # NOTE: v7x has only 64 MiB VMEM/TC — if this estimate approaches ~48 MiB, shrink
    # token_tile or move the table to an HBM DMA gather (see module TODO).  v5e/v6e: 128 MiB.

    def _const_spec(shape):
        # Constant across grid steps -> single-buffered, VMEM-resident (DMA'd once).
        return pl.BlockSpec(shape, lambda t: (0, 0), pipeline_mode=pl.Buffered(1))

    grid_spec = pltpu.PrefetchScalarGridSpec(
        num_scalar_prefetch=0,
        grid=(T_pad // TT,),
        in_specs=[
            pl.BlockSpec((TT, 1), lambda t: (t, 0)),   # token ids: streamed per tile
            _const_spec((N, E)),                       # embedding table
            _const_spec((E, H2)),                      # w1
            _const_spec((1, H2)),                      # b1 (f32)
            _const_spec((H2, H)),                      # w2
            _const_spec((1, H)),                       # b2 (f32)
        ],
        out_specs=pl.BlockSpec((TT // fold, fold * H), lambda t: (t, 0)),  # lane-dense
    )

    out_folded = pl.pallas_call(
        _make_kernel(fold),
        out_shape=jax.ShapeDtypeStruct((T_pad // fold, fold * H), pdt),
        grid_spec=grid_spec,
        compiler_params=pltpu.CompilerParams(
            # Token tiles are independent.
            # TODO(synk): on v7x verify the token axis shards across the 2 TCs; use
            #             pltpu.CORE_PARALLEL if plain "parallel" does not.
            dimension_semantics=("parallel",),
            vmem_limit_bytes=vmem_limit,
        ),
    )(ids_flat, emb_table, w1, b1_2d, w2, b2_2d)

    # Unfold the lane-dense packing back to (T_pad, H).
    if fold > 1:
        out = out_folded.reshape(T_pad // TT, TT // fold, fold, H)
        out = jnp.transpose(out, (0, 2, 1, 3)).reshape(T_pad, H)
    else:
        out = out_folded
    return out[:T].reshape(B, S, H)


if __name__ == "__main__":
    # Small shapes consistent with the module: batch=2, seq=8,
    # num_embeddings=16, embedding_dim=32, out_dim=64 (hidden=32).
    B, S = 2, 8
    num_embeddings, embedding_dim, out_dim = 16, 32, 64
    hidden = out_dim // 2

    key = jax.random.PRNGKey(0)
    k_ids, k_emb, k_w1, k_b1, k_w2, k_b2 = jax.random.split(key, 6)

    ids = jax.random.randint(k_ids, (B, S), 0, num_embeddings, dtype=jnp.int32)
    emb_table = jax.random.normal(k_emb, (num_embeddings, embedding_dim), dtype=jnp.float32)
    lim1 = 1.0 / (embedding_dim ** 0.5)
    w1 = jax.random.uniform(k_w1, (embedding_dim, hidden), jnp.float32, -lim1, lim1)
    b1 = jax.random.uniform(k_b1, (hidden,), jnp.float32, -lim1, lim1)
    lim2 = 1.0 / (hidden ** 0.5)
    w2 = jax.random.uniform(k_w2, (hidden, out_dim), jnp.float32, -lim2, lim2)
    b2 = jax.random.uniform(k_b2, (out_dim,), jnp.float32, -lim2, lim2)

    # Pure-JAX reference (same tanh-approx GELU as the kernel; dropout = eval-mode identity).
    emb = emb_table[ids]                                    # (B, S, E) gather
    h = emb @ w1 + b1
    h = 0.5 * h * (1.0 + jnp.tanh(_GELU_C * (h + 0.044715 * h ** 3)))
    ref = h @ w2 + b2

    # f32 parameters -> f32 MXU path, tight tolerance vs the reference.
    out = jax.block_until_ready(embedding_mlp(ids, emb_table, w1, b1, w2, b2))
    assert out.shape == (B, S, out_dim)
    assert jnp.allclose(out, ref, atol=1e-5, rtol=1e-5), "f32 mismatch vs reference"

    # bf16 table/weights -> full-rate bf16 MXU path with f32 accumulation (looser tolerance).
    out_bf16 = jax.block_until_ready(
        embedding_mlp(ids, emb_table.astype(jnp.bfloat16), w1.astype(jnp.bfloat16), b1,
                      w2.astype(jnp.bfloat16), b2))
    assert out_bf16.shape == (B, S, out_dim) and out_bf16.dtype == jnp.bfloat16
    assert jnp.allclose(out_bf16.astype(jnp.float32), ref, atol=5e-2, rtol=5e-2), \
        "bf16 mismatch vs reference"

    print("KERNEL_OK")
</pallas_src>

<mosaic_0001>
module attributes {stable_mosaic.version = 11 : i64} {
  func.func @kernel(%arg0: i32, %arg1: memref<16x1xi32, #tpu.memory_space<vmem>>, %arg2: memref<16x32xf32, #tpu.memory_space<vmem>>, %arg3: memref<32x32xf32, #tpu.memory_space<vmem>>, %arg4: memref<1x32xf32, #tpu.memory_space<vmem>>, %arg5: memref<32x64xf32, #tpu.memory_space<vmem>>, %arg6: memref<1x64xf32, #tpu.memory_space<vmem>>, %arg7: memref<8x128xf32, #tpu.memory_space<vmem>>) attributes {dimension_semantics = [#tpu.dimension_semantics<parallel>], iteration_bounds = array<i64: 1>, scalar_prefetch = 0 : i64, scratch_operands = 0 : i64, tpu.core_type = #tpu.core_type<tc>, window_params = [{transform_indices = @transform_0, window_bounds = array<i64: 16, 1>}, {pipeline_mode = #tpu.pipeline_mode<synchronous>, transform_indices = @transform_1, window_bounds = array<i64: 16, 32>}, {pipeline_mode = #tpu.pipeline_mode<synchronous>, transform_indices = @transform_2, window_bounds = array<i64: 32, 32>}, {pipeline_mode = #tpu.pipeline_mode<synchronous>, transform_indices = @transform_3, window_bounds = array<i64: 1, 32>}, {pipeline_mode = #tpu.pipeline_mode<synchronous>, transform_indices = @transform_4, window_bounds = array<i64: 32, 64>}, {pipeline_mode = #tpu.pipeline_mode<synchronous>, transform_indices = @transform_5, window_bounds = array<i64: 1, 64>}, {transform_indices = @transform_6, window_bounds = array<i64: 8, 128>}]} {
    %c0 = arith.constant 0 : index
    %c0_0 = arith.constant 0 : index
    %0 = vector.load %arg1[%c0, %c0_0] : memref<16x1xi32, #tpu.memory_space<vmem>>, vector<16x1xi32>
    %1 = tpu.iota {dimensions = array<i32: 1>} : vector<16x16xi32>
    %2 = vector.broadcast %0 : vector<16x1xi32> to vector<16x16xi32>
    %3 = arith.cmpi eq, %1, %2 : vector<16x16xi32>
    %4 = arith.extui %3 : vector<16x16xi1> to vector<16x16xi32>
    %5 = arith.sitofp %4 : vector<16x16xi32> to vector<16x16xf32>
    %c0_1 = arith.constant 0 : index
    %c0_2 = arith.constant 0 : index
    %6 = vector.load %arg2[%c0_1, %c0_2] : memref<16x32xf32, #tpu.memory_space<vmem>>, vector<16x32xf32>
    %cst = arith.constant dense<0.000000e+00> : vector<16x32xf32>
    %7 = tpu.matmul %5, %6, %cst {dimension_numbers = #tpu.dot_dimension_numbers<[1], [0], [0], [1], [0, 0, 1, 1], [], []>} : vector<16x16xf32>, vector<16x32xf32>, vector<16x32xf32> -> vector<16x32xf32>
    %c0_3 = arith.constant 0 : index
    %c0_4 = arith.constant 0 : index
    %8 = vector.load %arg3[%c0_3, %c0_4] : memref<32x32xf32, #tpu.memory_space<vmem>>, vector<32x32xf32>
    %cst_5 = arith.constant dense<0.000000e+00> : vector<16x32xf32>
    %9 = tpu.matmul %7, %8, %cst_5 {dimension_numbers = #tpu.dot_dimension_numbers<[1], [0], [0], [1], [0, 0, 1, 1], [], []>} : vector<16x32xf32>, vector<32x32xf32>, vector<16x32xf32> -> vector<16x32xf32>
    %c0_6 = arith.constant 0 : index
    %c0_7 = arith.constant 0 : index
    %10 = vector.load %arg4[%c0_6, %c0_7] : memref<1x32xf32, #tpu.memory_space<vmem>>, vector<1x32xf32>
    %11 = vector.broadcast %10 : vector<1x32xf32> to vector<16x32xf32>
    %12 = arith.addf %9, %11 : vector<16x32xf32>
    %cst_8 = arith.constant 5.000000e-01 : f32
    %13 = vector.broadcast %cst_8 : f32 to vector<16x32xf32>
    %14 = arith.mulf %13, %12 : vector<16x32xf32>
    %cst_9 = arith.constant 4.471500e-02 : f32
    %15 = vector.broadcast %cst_9 : f32 to vector<16x32xf32>
    %16 = arith.mulf %15, %12 : vector<16x32xf32>
    %17 = arith.mulf %16, %12 : vector<16x32xf32>
    %18 = arith.mulf %17, %12 : vector<16x32xf32>
    %19 = arith.addf %12, %18 : vector<16x32xf32>
    %cst_10 = arith.constant 0.797884583 : f32
    %20 = vector.broadcast %cst_10 : f32 to vector<16x32xf32>
    %21 = arith.mulf %20, %19 : vector<16x32xf32>
    %22 = math.tanh %21 : vector<16x32xf32>
    %cst_11 = arith.constant 1.000000e+00 : f32
    %23 = vector.broadcast %cst_11 : f32 to vector<16x32xf32>
    %24 = arith.addf %23, %22 : vector<16x32xf32>
    %25 = arith.mulf %14, %24 : vector<16x32xf32>
    %c0_12 = arith.constant 0 : index
    %c0_13 = arith.constant 0 : index
    %26 = vector.load %arg5[%c0_12, %c0_13] : memref<32x64xf32, #tpu.memory_space<vmem>>, vector<32x64xf32>
    %cst_14 = arith.constant dense<0.000000e+00> : vector<16x64xf32>
    %27 = tpu.matmul %25, %26, %cst_14 {dimension_numbers = #tpu.dot_dimension_numbers<[1], [0], [0], [1], [0, 0, 1, 1], [], []>} : vector<16x32xf32>, vector<32x64xf32>, vector<16x64xf32> -> vector<16x64xf32>
    %c0_15 = arith.constant 0 : index
    %c0_16 = arith.constant 0 : index
    %28 = vector.load %arg6[%c0_15, %c0_16] : memref<1x64xf32, #tpu.memory_space<vmem>>, vector<1x64xf32>
    %29 = vector.broadcast %28 : vector<1x64xf32> to vector<16x64xf32>
    %30 = arith.addf %27, %29 : vector<16x64xf32>
    %31 = vector.extract_strided_slice %30 {offsets = [0, 0], sizes = [8, 64], strides = [1, 1]} : vector<16x64xf32> to vector<8x64xf32>
    %32 = vector.extract_strided_slice %30 {offsets = [8, 0], sizes = [8, 64], strides = [1, 1]} : vector<16x64xf32> to vector<8x64xf32>
    %33 = tpu.concatenate %31, %32 in 1 : vector<8x64xf32>, vector<8x64xf32> -> vector<8x128xf32>
    %c0_17 = arith.constant 0 : index
    %c0_18 = arith.constant 0 : index
    %34 = vector.load %arg7[%c0_17, %c0_18] : memref<8x128xf32, #tpu.memory_space<vmem>>, vector<8x128xf32>
    tpu.vector_store %arg7[%c0_17, %c0_18], %33 {strides = array<i32>} : memref<8x128xf32, #tpu.memory_space<vmem>>, vector<8x128xf32>,
    return
  }
  func.func @transform_0(%arg0: i32) -> (i32, i32) {
    %c0_i32 = arith.constant 0 : i32
    %c0_i32_0 = arith.constant 0 : i32
    return %arg0, %c0_i32 : i32, i32
  }
  func.func @transform_1(%arg0: i32) -> (i32, i32) {
    %c0_i32 = arith.constant 0 : i32
    %c0_i32_0 = arith.constant 0 : i32
    %c0_i32_1 = arith.constant 0 : i32
    return %c0_i32, %c0_i32_0 : i32, i32
  }
  func.func @transform_2(%arg0: i32) -> (i32, i32) {
    %c0_i32 = arith.constant 0 : i32
    %c0_i32_0 = arith.constant 0 : i32
    %c0_i32_1 = arith.constant 0 : i32
    return %c0_i32, %c0_i32_0 : i32, i32
  }
  func.func @transform_3(%arg0: i32) -> (i32, i32) {
    %c0_i32 = arith.constant 0 : i32
    %c0_i32_0 = arith.constant 0 : i32
    %c0_i32_1 = arith.constant 0 : i32
    return %c0_i32, %c0_i32_0 : i32, i32
  }
  func.func @transform_4(%arg0: i32) -> (i32, i32) {
    %c0_i32 = arith.constant 0 : i32
    %c0_i32_0 = arith.constant 0 : i32
    %c0_i32_1 = arith.constant 0 : i32
    return %c0_i32, %c0_i32_0 : i32, i32
  }
  func.func @transform_5(%arg0: i32) -> (i32, i32) {
    %c0_i32 = arith.constant 0 : i32
    %c0_i32_0 = arith.constant 0 : i32
    %c0_i32_1 = arith.constant 0 : i32
    return %c0_i32, %c0_i32_0 : i32, i32
  }
  func.func @transform_6(%arg0: i32) -> (i32, i32) {
    %c0_i32 = arith.constant 0 : i32
    %c0_i32_0 = arith.constant 0 : i32
    return %arg0, %c0_i32 : i32, i32
  }
}

</mosaic_0001>

<llo_original>
// kernel: tpu_custom_call.1
$region0: #{tpu_custom_call.1}
  #allocation0 [shape = 'u32[]', space=smem, size = 0x4, offset = 0x4, fixed_abs, tag = 'smem constant byte address 0x4 - core index']
  #allocation1 [shape = 'u32[72,128]{1,0:T(1,128)}', space=vmem, size = 0x9000, scoped, tag = 'internal scratch']
  %s0 = inlined_call_operand.vmem [shape: s32[16,1], index: 0, kind: input, shape index: {}]
  %s1 = inlined_call_operand.vmem [shape: f32[16,32], index: 1, kind: input, shape index: {}]
  %s2 = inlined_call_operand.hbm [shape: f32[32,32], index: 2, kind: input, shape index: {}]
  %s3 = inlined_call_operand.vmem [shape: f32[1,32], index: 3, kind: input, shape index: {}]
  %s4 = inlined_call_operand.hbm [shape: f32[32,64], index: 4, kind: input, shape index: {}]
  %s5 = inlined_call_operand.vmem [shape: f32[1,64], index: 5, kind: input, shape index: {}]
  %s6 = inlined_call_operand.hbm [shape: f32[8,128], index: 6, kind: output, shape index: {}]
  %s7 = sld [smem:[#allocation0]]
  $region42: #{tpu_custom_call.1} parent=0
    _
  %s9 = ssub.s32 1, %s7
  %s10 = scalar_select 0, %s9, %s7
  $region1: #{tpu_custom_call.1} parent=0
    #allocation2 [shape = 'u8[16384]{0}', space=vmem, size = 0x4000, scoped, tag = 'input window, operand 2, single buffered']
    #allocation3 [shape = 's32[1]{0}', space=sflag, size = 0x4, scoped, tag = 'scoped memory for tpu_custom_call.1']
    #allocation4 [shape = 's32[1]{0}', space=sflag, size = 0x4, scoped, tag = 'scoped memory for tpu_custom_call.1']
    #allocation5 [shape = 'u8[16384]{0}', space=vmem, size = 0x4000, scoped, tag = 'input window, operand 4, single buffered']
    #allocation6 [shape = 's32[1]{0}', space=sflag, size = 0x4, scoped, tag = 'scoped memory for tpu_custom_call.1']
    #allocation7 [shape = 'u8[4096]{0}', space=vmem, size = 0x1000, scoped, tag = 'output window, operand 0, single buffered']
    %11 = vsyncpa [#allocation3], 0
    %12 = vsyncpa [#allocation6], 0
    %13 = vsyncpa [#allocation4], 0
    // Predicated region
    $region2: #{tpu_custom_call.1} parent=1 // pred_check
      _
    $region3: #{tpu_custom_call.1} parent=1 // pred_check_branch
      %15 = sbr.rel (0) target = $region5
    $region4: #{tpu_custom_call.1} parent=1 // pred_region
      _
    $region5: #{tpu_custom_call.1} parent=1 // pred_fallthru
      _
    // Predicated region
    $region6: #{tpu_custom_call.1} parent=1 // pred_check
      _
    $region7: #{tpu_custom_call.1} parent=1 // pred_check_branch
      %17 = sbr.rel (0) target = $region9
    $region8: #{tpu_custom_call.1} parent=1 // pred_region
      _
    $region9: #{tpu_custom_call.1} parent=1 // pred_fallthru
      _
    // Predicated region
    $region10: #{tpu_custom_call.1} parent=1 // pred_check
      _
    $region11: #{tpu_custom_call.1} parent=1 // pred_check_branch
      %19 = sbr.rel (0) target = $region13
    $region12: #{tpu_custom_call.1} parent=1 // pred_region
      %21 = vsyncadd [#allocation3], 0
      %s22 = sshll.u32 %s2, 4
      %s23 = int_to_ptr.hbm [resolvable:$true] %s22
      %s24 = sshll.u32 [#allocation2], 4
      %s25 = int_to_ptr.vmem [resolvable:$true] %s24
      %30 = dma.hbm_to_vmem [thread:$0]  %s23, 512, %s25, [#allocation3], 128, 128, 8
    $region13: #{tpu_custom_call.1} parent=1 // pred_fallthru
      _
    // Predicated region
    $region14: #{tpu_custom_call.1} parent=1 // pred_check
      _
    $region15: #{tpu_custom_call.1} parent=1 // pred_check_branch
      %32 = sbr.rel (0) target = $region17
    $region16: #{tpu_custom_call.1} parent=1 // pred_region
      _
    $region17: #{tpu_custom_call.1} parent=1 // pred_fallthru
      _
    // Predicated region
    $region18: #{tpu_custom_call.1} parent=1 // pred_check
      _
    $region19: #{tpu_custom_call.1} parent=1 // pred_check_branch
      %34 = sbr.rel (0) target = $region21
    $region20: #{tpu_custom_call.1} parent=1 // pred_region
      %36 = vsyncadd [#allocation6], 0
      %s37 = sshll.u32 %s4, 4
      %s38 = int_to_ptr.hbm [resolvable:$true] %s37
      %s39 = sshll.u32 [#allocation5], 4
      %s40 = int_to_ptr.vmem [resolvable:$true] %s39
      %45 = dma.hbm_to_vmem [thread:$0]  %s38, 512, %s40, [#allocation6], 128, 128, 8
    $region21: #{tpu_custom_call.1} parent=1 // pred_fallthru
      _
    // Predicated region
    $region22: #{tpu_custom_call.1} parent=1 // pred_check
      _
    $region23: #{tpu_custom_call.1} parent=1 // pred_check_branch
      %47 = sbr.rel (0) target = $region25
    $region24: #{tpu_custom_call.1} parent=1 // pred_region
      _
    $region25: #{tpu_custom_call.1} parent=1 // pred_fallthru
      _
    // Predicated region
    $region26: #{tpu_custom_call.1} parent=1 // pred_check
      _
    $region27: #{tpu_custom_call.1} parent=1 // pred_check_branch
      %49 = sbr.rel (0) target = $region29
    $region28: #{tpu_custom_call.1} parent=1 // pred_region
      %51 = dma.done [#allocation3], 512
    $region29: #{tpu_custom_call.1} parent=1 // pred_fallthru
      _
    // Predicated region
    $region30: #{tpu_custom_call.1} parent=1 // pred_check
      _
    $region31: #{tpu_custom_call.1} parent=1 // pred_check_branch
      %53 = sbr.rel (0) target = $region33
    $region32: #{tpu_custom_call.1} parent=1 // pred_region
      %55 = dma.done [#allocation6], 512
    $region33: #{tpu_custom_call.1} parent=1 // pred_fallthru
      _
    %v56 = vld [vmem:[%s0] sm:$0xff]
    %v57 = vld [vmem:[%s0 + $0x8] sm:$0xff]
    %v58 = vlaneseq
    %v59 = vand.u32 %v58, 127
    %60 = vset.pattern.permute.xlu0 0
    %61 = vperm.xlu0 %60, %v56
    %v62 = vpop.permute.xlu0 %61
    %63 = vset.pattern.permute.xlu0 0
    %64 = vperm.xlu0 %63, %v57
    %v65 = vpop.permute.xlu0 %64
    %vm66 = vcmp.eq.s32.totalorder %v59, %v62
    %vm67 = vcmp.eq.s32.totalorder %v59, %v65
    %v68 = vsel %vm66, 1, 0
    %v69 = vsel %vm67, 1, 0
    %v70 = vcvt.s32.f32 %v68
    %v71 = vcvt.s32.f32 %v69
    %v72 = vld [vmem:[%s1] sm:$0xff]
    %v73 = vld [vmem:[%s1 + $0x8] sm:$0xff]
    %vm74 = vcmask 130048
    %v76 = vsel %vm74, %v70, 0
    %v79 = vsel %vm74, %v71, 0
    %81 = vmatpush.msra.mxu0 0.0
    %82 = vmatpush.msra.mxu0 0.0
    %83 = vmatpush.msra.mxu0 0.0
    %84 = vmatpush.msra.mxu0 0.0
    %85 = vmatpush.msra.mxu0 0.0
    %86 = vmatpush.msra.mxu0 0.0
    %87 = vmatpush.msra.mxu0 0.0
    %88 = vmatpush.msra.mxu0 0.0
    %89 = vmatpush.msra.mxu0 0.0
    %90 = vmatpush.msra.mxu0 0.0
    %91 = vmatpush.msra.mxu0 0.0
    %92 = vmatpush.msra.mxu0 0.0
    %93 = vmatpush.msra.mxu0 0.0
    %94 = vmatpush.msra.mxu0 0.0
    %95 = vmatpush.msra.mxu0 %v73
    %96 = vmatpush.msra.mxu0 %v72
    %97 = vmatmul.f32.gmra.mxu0 %v76
    %v98 = vpop.f32.mrf.mxu0
    %v99 = vadd.f32 0.0, %v98
    %100 = vmatmul.f32.gmra.mxu0 %v79
    %v101 = vpop.f32.mrf.mxu0
    %v102 = vadd.f32 0.0, %v101
    %103 = vdwg.mxu0
    %v104 = vld [vmem:[#allocation2] sm:$0xff]
    %v105 = vld [vmem:[#allocation2 + $0x8] sm:$0xff]
    %v106 = vld [vmem:[#allocation2 + $0x10] sm:$0xff]
    %v107 = vld [vmem:[#allocation2 + $0x18] sm:$0xff]
    %v108 = vld [vmem:[%s3] sm:$0x1]
    %v110 = vperm.slane %v108, 0
    %vm112 = vcmask 261120
    %v114 = vsel %vm112, %v99, 0
    %v117 = vsel %vm112, %v102, 0
    %119 = vmatpush.msra.mxu0 0.0
    %120 = vmatpush.msra.mxu0 0.0
    %121 = vmatpush.msra.mxu0 0.0
    %122 = vmatpush.msra.mxu0 0.0
    %123 = vmatpush.msra.mxu0 0.0
    %124 = vmatpush.msra.mxu0 0.0
    %125 = vmatpush.msra.mxu0 0.0
    %126 = vmatpush.msra.mxu0 0.0
    %127 = vmatpush.msra.mxu0 0.0
    %128 = vmatpush.msra.mxu0 0.0
    %129 = vmatpush.msra.mxu0 0.0
    %130 = vmatpush.msra.mxu0 0.0
    %131 = vmatpush.msra.mxu0 %v107
    %132 = vmatpush.msra.mxu0 %v106
    %133 = vmatpush.msra.mxu0 %v105
    %134 = vmatpush.msra.mxu0 %v104
    %135 = vmatmul.f32.gmra.mxu0 %v114
    %v136 = vpop.f32.mrf.mxu0
    %v137 = vadd.f32 %v110, %v136
    %138 = vmatmul.f32.gmra.mxu0 %v117
    %v139 = vpop.f32.mrf.mxu0
    %v140 = vadd.f32 %v110, %v139
    %141 = vdwg.mxu0
    %v142 = vmul.f32 %v137, 0.5
    %v143 = vmul.f32 %v140, 0.5
    %v144 = vmul.f32 %v137, 0.044715
    %v145 = vmul.f32 %v140, 0.044715
    %v146 = vmul.f32 %v144, %v137
    %v147 = vmul.f32 %v145, %v140
    %v148 = vmul.f32 %v146, %v137
    %v149 = vmul.f32 %v147, %v140
    %v150 = vadd.f32 %v137, %v148
    %v151 = vadd.f32 %v140, %v149
    %v152 = vmul.f32 %v150, 0.7978846
    %v153 = vmul.f32 %v151, 0.7978846
    %v154 = vtanh.pop %v152
    %v155 = vtanh.pop %v153
    %v156 = vadd.f32 %v154, 1.0
    %v157 = vadd.f32 %v155, 1.0
    %v158 = vmul.f32 %v142, %v156
    %v159 = vmul.f32 %v143, %v157
    %v160 = vld [vmem:[#allocation5] sm:$0xff]
    %v161 = vld [vmem:[#allocation5 + $0x8] sm:$0xff]
    %v162 = vld [vmem:[#allocation5 + $0x10] sm:$0xff]
    %v163 = vld [vmem:[#allocation5 + $0x18] sm:$0xff]
    %v164 = vld [vmem:[%s5] sm:$0x1]
    %v166 = vperm.slane %v164, 0
    %v169 = vsel %vm112, %v158, 0
    %v172 = vsel %vm112, %v159, 0
    %174 = vmatpush.msra.mxu0 0.0
    %175 = vmatpush.msra.mxu0 0.0
    %176 = vmatpush.msra.mxu0 0.0
    %177 = vmatpush.msra.mxu0 0.0
    %178 = vmatpush.msra.mxu0 0.0
    %179 = vmatpush.msra.mxu0 0.0
    %180 = vmatpush.msra.mxu0 0.0
    %181 = vmatpush.msra.mxu0 0.0
    %182 = vmatpush.msra.mxu0 0.0
    %183 = vmatpush.msra.mxu0 0.0
    %184 = vmatpush.msra.mxu0 0.0
    %185 = vmatpush.msra.mxu0 0.0
    %186 = vmatpush.msra.mxu0 %v163
    %187 = vmatpush.msra.mxu0 %v162
    %188 = vmatpush.msra.mxu0 %v161
    %189 = vmatpush.msra.mxu0 %v160
    %190 = vmatmul.f32.gmra.mxu0 %v169
    %v191 = vpop.f32.mrf.mxu0
    %v192 = vadd.f32 %v166, %v191
    %193 = vmatmul.f32.gmra.mxu0 %v172
    %v194 = vpop.f32.mrf.mxu0
    %v195 = vadd.f32 %v166, %v194
    %196 = vdwg.mxu0
    %198 = vrot.lane.b32.xlu0 %v195, 64
    %v199 = vpop.permute.xlu0 %198
    %vm201 = vcmask 523264
    %v202 = vsel %vm201, %v192, %v199
    %203 = vst [vmem:[#allocation7] sm:$0xff] %v202
    // Predicated region
    $region34: #{tpu_custom_call.1} parent=1 // pred_check
      _
    $region35: #{tpu_custom_call.1} parent=1 // pred_check_branch
      %205 = sbr.rel (0) target = $region37
    $region36: #{tpu_custom_call.1} parent=1 // pred_region
      %207 = vsyncadd [#allocation4], 0
      %s209 = sshll.u32 [#allocation7], 4
      %s210 = int_to_ptr.vmem [resolvable:$true] %s209
      %s211 = sshll.u32 %s6, 4
      %s212 = int_to_ptr.hbm [resolvable:$true] %s211
      %214 = dma.vmem_to_hbm [thread:$0]  %s210, 128, %s212, [#allocation4]
    $region37: #{tpu_custom_call.1} parent=1 // pred_fallthru
      _
    // Predicated region
    $region38: #{tpu_custom_call.1} parent=1 // pred_check
      _
    $region39: #{tpu_custom_call.1} parent=1 // pred_check_branch
      %216 = sbr.rel (0) target = $region41
    $region40: #{tpu_custom_call.1} parent=1 // pred_region
      %218 = dma.done [#allocation4], 128
    $region41: #{tpu_custom_call.1} parent=1 // pred_fallthru
      _
    %219 = vsyncpa [#allocation3], 1
    %220 = vsyncpa [#allocation6], 1
    %221 = vsyncpa [#allocation4], 1

</llo_original>
